<compile_context>
chip_gen: v5e
topology: v5e:2x2
jax: 0.10.0
libtpu: 0.0.40
codegen_flags: <defaults>
</compile_context>

<pallas_src>
import jax
import jax.numpy as jnp
from jax import lax
from jax.experimental import pallas as pl
from jax.experimental.pallas import tpu as pltpu


HIDDEN_SIZE = 32
INPUT_SIZE = 8     # X_train.shape[2] stand-in
OUTPUT_SIZE = 1
NUM_LAYERS = 1     # single layer -> LSTM-internal dropout disabled (as in the module)

BT_MAX = 256       # max batch rows per grid step (sized for v7x 64 MiB VMEM headroom)


def _lstm_fc_kernel(x_ref, p_ref, y_ref):
    """One batch tile of the full forward pass.

    x_ref : (Bt, T, D)      input tile, native (batch, time, feature) layout
    p_ref : (D+H+2, 4H)     packed params:
                              rows [0:D)        W_ih  (i/f/o columns pre-scaled by 0.5)
                              rows [D:D+H)      W_hh  (same pre-scale)
                              row  D+H          b_ih + b_hh (same pre-scale)
                              row  D+H+1        lanes [0:H) = fc weight, lane H = fc bias
                            gate column blocks are ordered [i, f, o, g]
    y_ref : (Bt, 1)         output tile
    """
    Bt, T, D = x_ref.shape
    G = p_ref.shape[1]          # 4H
    H = G // 4

    w_ih = p_ref[0:D, :]                          # (D, 4H)
    w_hh = p_ref[D:D + H, :]                      # (H, 4H)
    b = p_ref[D + H:D + H + 1, :]                 # (1, 4H)
    wfc = p_ref[D + H + 1:D + H + 2, 0:H]         # (1, H)
    bfc = p_ref[D + H + 1:D + H + 2, H:H + 1]     # (1, 1)

    # Hoisted lane-constant post-transform: sigmoid(z) = 0.5*tanh(z/2) + 0.5 on the i/f/o
    # lane blocks (the 0.5 pre-scale is already folded into the packed weights), identity
    # (pure tanh) on the trailing g block.
    lane = lax.broadcasted_iota(jnp.int32, (1, G), 1)
    is_g = lane >= 3 * H
    post_scale = jnp.where(is_g, 1.0, 0.5).astype(jnp.float32)
    post_bias = jnp.where(is_g, 0.0, 0.5).astype(jnp.float32)

    h = jnp.zeros((Bt, H), jnp.float32)
    c = jnp.zeros((Bt, H), jnp.float32)

    # T is static and small -> fully unrolled so the scheduler interleaves the (off-path)
    # x_t @ W_ih pushes with the previous step's tanh/VPU work.
    for t in range(T):
        x_t = x_ref[:, t, :]                                      # (Bt, D)
        z = (jnp.dot(x_t, w_ih, preferred_element_type=jnp.float32)
             + jnp.dot(h, w_hh, preferred_element_type=jnp.float32)
             + b)                                                 # (Bt, 4H), pre-scaled
        act = jnp.tanh(z) * post_scale + post_bias                # one full-width EUP call
        i_g = act[:, 0 * H:1 * H]
        f_g = act[:, 1 * H:2 * H]
        o_g = act[:, 2 * H:3 * H]
        g_g = act[:, 3 * H:4 * H]
        c = f_g * c + i_g * g_g
        h = o_g * jnp.tanh(c)

    # Dropout (eval mode) == identity.
    # FC with N=1 is a terrible MXU shape -> VPU broadcast-multiply + lane reduce.
    y_ref[...] = jnp.sum(h * wfc, axis=-1, keepdims=True) + bfc


def init_params(key, input_size=INPUT_SIZE, hidden_size=HIDDEN_SIZE,
                output_size=OUTPUT_SIZE):
    """Deterministic init mirroring PyTorch's U(-1/sqrt(H), 1/sqrt(H)), PyTorch layout."""
    ks = jax.random.split(key, 6)
    bound = 1.0 / jnp.sqrt(hidden_size)
    w_ih = jax.random.uniform(ks[0], (4 * hidden_size, input_size),
                              minval=-bound, maxval=bound, dtype=jnp.float32)
    w_hh = jax.random.uniform(ks[1], (4 * hidden_size, hidden_size),
                              minval=-bound, maxval=bound, dtype=jnp.float32)
    b_ih = jax.random.uniform(ks[2], (4 * hidden_size,),
                              minval=-bound, maxval=bound, dtype=jnp.float32)
    b_hh = jax.random.uniform(ks[3], (4 * hidden_size,),
                              minval=-bound, maxval=bound, dtype=jnp.float32)
    w_fc = jax.random.uniform(ks[4], (output_size, hidden_size),
                              minval=-bound, maxval=bound, dtype=jnp.float32)
    b_fc = jax.random.uniform(ks[5], (output_size,),
                              minval=-bound, maxval=bound, dtype=jnp.float32)
    return dict(w_ih=w_ih, w_hh=w_hh, b_ih=b_ih, b_hh=b_hh, w_fc=w_fc, b_fc=b_fc)


def prepare_params(params, hidden_size=HIDDEN_SIZE):
    """One-time repack of PyTorch-layout params into a single fused (D+H+2, 4H) slab."""
    H = hidden_size
    order = jnp.array([0, 1, 3, 2])                       # (i,f,g,o) -> (i,f,o,g)
    w_ih_g = params["w_ih"].reshape(4, H, -1)[order]      # (4, H, D)
    w_hh_g = params["w_hh"].reshape(4, H, H)[order]       # (4, H, H)
    b_g = (params["b_ih"] + params["b_hh"]).reshape(4, H)[order]
    D = w_ih_g.shape[-1]
    wih_cat = jnp.transpose(w_ih_g, (2, 0, 1)).reshape(D, 4 * H)   # (D, 4H)
    whh_cat = jnp.transpose(w_hh_g, (2, 0, 1)).reshape(H, 4 * H)   # (H, 4H)
    b_cat = b_g.reshape(1, 4 * H)                                  # (1, 4H)

    # Fold the sigmoid->tanh pre-scale (0.5) into the i/f/o gate columns so the kernel can
    # apply a single full-width tanh per step.
    col_scale = jnp.where(jnp.arange(4 * H) < 3 * H, 0.5, 1.0).astype(jnp.float32)
    wih_cat = wih_cat * col_scale
    whh_cat = whh_cat * col_scale
    b_cat = b_cat * col_scale

    # fc row: weight in lanes [0:H), bias at lane H.
    fc_row = jnp.zeros((1, 4 * H), jnp.float32)
    fc_row = fc_row.at[0, :H].set(params["w_fc"].reshape(H))
    fc_row = fc_row.at[0, H].set(params["b_fc"][0])

    slab = jnp.concatenate([wih_cat, whh_cat, b_cat, fc_row], axis=0)  # (D+H+2, 4H)
    return slab.astype(jnp.float32)


def lstm_model_forward(x_btd, params_slab, *, bt_max=BT_MAX):
    """x_btd: (B, T, D) float32 -> (B, 1) float32."""
    B, T, D = x_btd.shape
    x = x_btd.astype(jnp.float32)

    if B <= bt_max:
        # Common case: whole batch in one grid step, no wrapper pad/transpose/reshape.
        Bt, n_tiles, Bp = B, 1, B
    else:
        Bt = bt_max
        n_tiles = (B + Bt - 1) // Bt
        Bp = n_tiles * Bt
        x = jnp.pad(x, ((0, Bp - B), (0, 0), (0, 0)))

    y_pad = pl.pallas_call(
        _lstm_fc_kernel,
        out_shape=jax.ShapeDtypeStruct((Bp, OUTPUT_SIZE), jnp.float32),
        grid=(n_tiles,),
        in_specs=[
            pl.BlockSpec((Bt, T, D), lambda i: (i, 0, 0)),        # batch-tiled input
            pl.BlockSpec(params_slab.shape, lambda i: (0, 0)),    # params resident
        ],
        out_specs=pl.BlockSpec((Bt, OUTPUT_SIZE), lambda i: (i, 0)),
        compiler_params=pltpu.CompilerParams(
            dimension_semantics=("parallel",),        # batch tiles shard across TCs (v7x)
            vmem_limit_bytes=32 * 1024 * 1024,        # portable across v5e/v6e/v7x
        ),
    )(x, params_slab)
    return y_pad[:B]


def lstm_model_reference(x_btd, params, hidden_size=HIDDEN_SIZE):
    """Pure-JAX reference matching nn.LSTM + fc semantics (PyTorch-layout params)."""
    B, T, D = x_btd.shape
    H = hidden_size
    w_ih = params["w_ih"]                  # (4H, D)
    w_hh = params["w_hh"]                  # (4H, H)
    b = params["b_ih"] + params["b_hh"]    # (4H,)

    def step(carry, x_t):
        h, c = carry
        gates = x_t @ w_ih.T + h @ w_hh.T + b        # (B, 4H), order i,f,g,o
        i_g = jax.nn.sigmoid(gates[:, 0 * H:1 * H])
        f_g = jax.nn.sigmoid(gates[:, 1 * H:2 * H])
        g_g = jnp.tanh(gates[:, 2 * H:3 * H])
        o_g = jax.nn.sigmoid(gates[:, 3 * H:4 * H])
        c_new = f_g * c + i_g * g_g
        h_new = o_g * jnp.tanh(c_new)
        return (h_new, c_new), None

    h0 = jnp.zeros((B, H), jnp.float32)
    c0 = jnp.zeros((B, H), jnp.float32)
    (h_last, _), _ = lax.scan(step, (h0, c0), jnp.transpose(x_btd, (1, 0, 2)))
    return h_last @ params["w_fc"].T + params["b_fc"]


if __name__ == "__main__":
    key = jax.random.PRNGKey(0)
    k_x, k_p = jax.random.split(key)

    B, T, D = 2, 8, INPUT_SIZE
    x = jax.random.normal(k_x, (B, T, D), dtype=jnp.float32)
    params = init_params(k_p)
    slab = prepare_params(params)          # one-time repack, cached outside hot path

    fwd = jax.jit(lstm_model_forward)
    y = jax.block_until_ready(fwd(x, slab))

    y_ref = lstm_model_reference(x, params)
    assert y.shape == (B, OUTPUT_SIZE), y.shape
    assert jnp.allclose(y, y_ref, atol=1e-4, rtol=1e-4), (y, y_ref)

    print("KERNEL_OK")
</pallas_src>

<mosaic_0001>
module attributes {stable_mosaic.version = 11 : i64} {
  func.func @_lstm_fc_kernel(%arg0: i32, %arg1: memref<2x8x8xf32, #tpu.memory_space<vmem>>, %arg2: memref<42x128xf32, #tpu.memory_space<vmem>>, %arg3: memref<2x1xf32, #tpu.memory_space<vmem>>) attributes {dimension_semantics = [#tpu.dimension_semantics<parallel>], iteration_bounds = array<i64: 1>, scalar_prefetch = 0 : i64, scratch_operands = 0 : i64, tpu.core_type = #tpu.core_type<tc>, window_params = [{transform_indices = @transform_0, window_bounds = array<i64: 2, 8, 8>}, {pipeline_mode = #tpu.pipeline_mode<synchronous>, transform_indices = @transform_1, window_bounds = array<i64: 42, 128>}, {transform_indices = @transform_2, window_bounds = array<i64: 2, 1>}]} {
    %c0 = arith.constant 0 : index
    %c0_0 = arith.constant 0 : index
    %0 = vector.load %arg2[%c0, %c0_0] : memref<42x128xf32, #tpu.memory_space<vmem>>, vector<8x128xf32>
    %c8 = arith.constant 8 : index
    %c0_1 = arith.constant 0 : index
    %1 = vector.load %arg2[%c8, %c0_1] : memref<42x128xf32, #tpu.memory_space<vmem>>, vector<32x128xf32>
    %c40 = arith.constant 40 : index
    %c0_2 = arith.constant 0 : index
    %2 = vector.load %arg2[%c40, %c0_2] : memref<42x128xf32, #tpu.memory_space<vmem>>, vector<1x128xf32>
    %c41 = arith.constant 41 : index
    %c0_3 = arith.constant 0 : index
    %3 = vector.load %arg2[%c41, %c0_3] : memref<42x128xf32, #tpu.memory_space<vmem>>, vector<1x32xf32>
    %c41_4 = arith.constant 41 : index
    %c32 = arith.constant 32 : index
    %4 = vector.load %arg2[%c41_4, %c32] : memref<42x128xf32, #tpu.memory_space<vmem>>, vector<1x1xf32>
    %5 = tpu.iota {dimensions = array<i32: 1>} : vector<1x128xi32>
    %c96_i32 = arith.constant 96 : i32
    %6 = vector.broadcast %c96_i32 : i32 to vector<1x128xi32>
    %7 = arith.cmpi sge, %5, %6 : vector<1x128xi32>
    %cst = arith.constant 1.000000e+00 : f32
    %cst_5 = arith.constant 5.000000e-01 : f32
    %8 = vector.broadcast %cst : f32 to vector<1x128xf32>
    %9 = vector.broadcast %cst_5 : f32 to vector<1x128xf32>
    %10 = arith.select %7, %8, %9 : vector<1x128xi1>, vector<1x128xf32>
    %cst_6 = arith.constant 0.000000e+00 : f32
    %cst_7 = arith.constant 5.000000e-01 : f32
    %11 = vector.broadcast %cst_6 : f32 to vector<1x128xf32>
    %12 = vector.broadcast %cst_7 : f32 to vector<1x128xf32>
    %13 = arith.select %7, %11, %12 : vector<1x128xi1>, vector<1x128xf32>
    %cst_8 = arith.constant 0.000000e+00 : f32
    %14 = vector.broadcast %cst_8 : f32 to vector<2x32xf32>
    %cst_9 = arith.constant 0.000000e+00 : f32
    %15 = vector.broadcast %cst_9 : f32 to vector<2x32xf32>
    %c0_10 = arith.constant 0 : index
    %c0_11 = arith.constant 0 : index
    %c0_12 = arith.constant 0 : index
    %16 = vector.load %arg1[%c0_10, %c0_11, %c0_12] : memref<2x8x8xf32, #tpu.memory_space<vmem>>, vector<2x1x8xf32>
    %17 = vector.shape_cast %16 : vector<2x1x8xf32> to vector<2x8xf32>
    %cst_13 = arith.constant dense<0.000000e+00> : vector<2x128xf32>
    %18 = tpu.matmul %17, %0, %cst_13 {dimension_numbers = #tpu.dot_dimension_numbers<[1], [0], [0], [1], [0, 0, 1, 1], [], []>} : vector<2x8xf32>, vector<8x128xf32>, vector<2x128xf32> -> vector<2x128xf32>
    %cst_14 = arith.constant dense<0.000000e+00> : vector<2x128xf32>
    %19 = tpu.matmul %14, %1, %cst_14 {dimension_numbers = #tpu.dot_dimension_numbers<[1], [0], [0], [1], [0, 0, 1, 1], [], []>} : vector<2x32xf32>, vector<32x128xf32>, vector<2x128xf32> -> vector<2x128xf32>
    %20 = arith.addf %18, %19 : vector<2x128xf32>
    %21 = vector.broadcast %2 : vector<1x128xf32> to vector<2x128xf32>
    %22 = arith.addf %20, %21 : vector<2x128xf32>
    %23 = math.tanh %22 : vector<2x128xf32>
    %24 = vector.broadcast %10 : vector<1x128xf32> to vector<2x128xf32>
    %25 = arith.mulf %23, %24 : vector<2x128xf32>
    %26 = vector.broadcast %13 : vector<1x128xf32> to vector<2x128xf32>
    %27 = arith.addf %25, %26 : vector<2x128xf32>
    %28 = vector.extract_strided_slice %27 {offsets = [0, 0], sizes = [2, 32], strides = [1, 1]} : vector<2x128xf32> to vector<2x32xf32>
    %29 = vector.extract_strided_slice %27 {offsets = [0, 32], sizes = [2, 32], strides = [1, 1]} : vector<2x128xf32> to vector<2x32xf32>
    %30 = vector.extract_strided_slice %27 {offsets = [0, 64], sizes = [2, 32], strides = [1, 1]} : vector<2x128xf32> to vector<2x32xf32>
    %31 = vector.extract_strided_slice %27 {offsets = [0, 96], sizes = [2, 32], strides = [1, 1]} : vector<2x128xf32> to vector<2x32xf32>
    %32 = arith.mulf %29, %15 : vector<2x32xf32>
    %33 = arith.mulf %28, %31 : vector<2x32xf32>
    %34 = arith.addf %32, %33 : vector<2x32xf32>
    %35 = math.tanh %34 : vector<2x32xf32>
    %36 = arith.mulf %30, %35 : vector<2x32xf32>
    %c0_15 = arith.constant 0 : index
    %c1 = arith.constant 1 : index
    %c0_16 = arith.constant 0 : index
    %37 = vector.load %arg1[%c0_15, %c1, %c0_16] : memref<2x8x8xf32, #tpu.memory_space<vmem>>, vector<2x1x8xf32>
    %38 = vector.shape_cast %37 : vector<2x1x8xf32> to vector<2x8xf32>
    %cst_17 = arith.constant dense<0.000000e+00> : vector<2x128xf32>
    %39 = tpu.matmul %38, %0, %cst_17 {dimension_numbers = #tpu.dot_dimension_numbers<[1], [0], [0], [1], [0, 0, 1, 1], [], []>} : vector<2x8xf32>, vector<8x128xf32>, vector<2x128xf32> -> vector<2x128xf32>
    %cst_18 = arith.constant dense<0.000000e+00> : vector<2x128xf32>
    %40 = tpu.matmul %36, %1, %cst_18 {dimension_numbers = #tpu.dot_dimension_numbers<[1], [0], [0], [1], [0, 0, 1, 1], [], []>} : vector<2x32xf32>, vector<32x128xf32>, vector<2x128xf32> -> vector<2x128xf32>
    %41 = arith.addf %39, %40 : vector<2x128xf32>
    %42 = vector.broadcast %2 : vector<1x128xf32> to vector<2x128xf32>
    %43 = arith.addf %41, %42 : vector<2x128xf32>
    %44 = math.tanh %43 : vector<2x128xf32>
    %45 = vector.broadcast %10 : vector<1x128xf32> to vector<2x128xf32>
    %46 = arith.mulf %44, %45 : vector<2x128xf32>
    %47 = vector.broadcast %13 : vector<1x128xf32> to vector<2x128xf32>
    %48 = arith.addf %46, %47 : vector<2x128xf32>
    %49 = vector.extract_strided_slice %48 {offsets = [0, 0], sizes = [2, 32], strides = [1, 1]} : vector<2x128xf32> to vector<2x32xf32>
    %50 = vector.extract_strided_slice %48 {offsets = [0, 32], sizes = [2, 32], strides = [1, 1]} : vector<2x128xf32> to vector<2x32xf32>
    %51 = vector.extract_strided_slice %48 {offsets = [0, 64], sizes = [2, 32], strides = [1, 1]} : vector<2x128xf32> to vector<2x32xf32>
    %52 = vector.extract_strided_slice %48 {offsets = [0, 96], sizes = [2, 32], strides = [1, 1]} : vector<2x128xf32> to vector<2x32xf32>
    %53 = arith.mulf %50, %34 : vector<2x32xf32>
    %54 = arith.mulf %49, %52 : vector<2x32xf32>
    %55 = arith.addf %53, %54 : vector<2x32xf32>
    %56 = math.tanh %55 : vector<2x32xf32>
    %57 = arith.mulf %51, %56 : vector<2x32xf32>
    %c0_19 = arith.constant 0 : index
    %c2 = arith.constant 2 : index
    %c0_20 = arith.constant 0 : index
    %58 = vector.load %arg1[%c0_19, %c2, %c0_20] : memref<2x8x8xf32, #tpu.memory_space<vmem>>, vector<2x1x8xf32>
    %59 = vector.shape_cast %58 : vector<2x1x8xf32> to vector<2x8xf32>
    %cst_21 = arith.constant dense<0.000000e+00> : vector<2x128xf32>
    %60 = tpu.matmul %59, %0, %cst_21 {dimension_numbers = #tpu.dot_dimension_numbers<[1], [0], [0], [1], [0, 0, 1, 1], [], []>} : vector<2x8xf32>, vector<8x128xf32>, vector<2x128xf32> -> vector<2x128xf32>
    %cst_22 = arith.constant dense<0.000000e+00> : vector<2x128xf32>
    %61 = tpu.matmul %57, %1, %cst_22 {dimension_numbers = #tpu.dot_dimension_numbers<[1], [0], [0], [1], [0, 0, 1, 1], [], []>} : vector<2x32xf32>, vector<32x128xf32>, vector<2x128xf32> -> vector<2x128xf32>
    %62 = arith.addf %60, %61 : vector<2x128xf32>
    %63 = vector.broadcast %2 : vector<1x128xf32> to vector<2x128xf32>
    %64 = arith.addf %62, %63 : vector<2x128xf32>
    %65 = math.tanh %64 : vector<2x128xf32>
    %66 = vector.broadcast %10 : vector<1x128xf32> to vector<2x128xf32>
    %67 = arith.mulf %65, %66 : vector<2x128xf32>
    %68 = vector.broadcast %13 : vector<1x128xf32> to vector<2x128xf32>
    %69 = arith.addf %67, %68 : vector<2x128xf32>
    %70 = vector.extract_strided_slice %69 {offsets = [0, 0], sizes = [2, 32], strides = [1, 1]} : vector<2x128xf32> to vector<2x32xf32>
    %71 = vector.extract_strided_slice %69 {offsets = [0, 32], sizes = [2, 32], strides = [1, 1]} : vector<2x128xf32> to vector<2x32xf32>
    %72 = vector.extract_strided_slice %69 {offsets = [0, 64], sizes = [2, 32], strides = [1, 1]} : vector<2x128xf32> to vector<2x32xf32>
    %73 = vector.extract_strided_slice %69 {offsets = [0, 96], sizes = [2, 32], strides = [1, 1]} : vector<2x128xf32> to vector<2x32xf32>
    %74 = arith.mulf %71, %55 : vector<2x32xf32>
    %75 = arith.mulf %70, %73 : vector<2x32xf32>
    %76 = arith.addf %74, %75 : vector<2x32xf32>
    %77 = math.tanh %76 : vector<2x32xf32>
    %78 = arith.mulf %72, %77 : vector<2x32xf32>
    %c0_23 = arith.constant 0 : index
    %c3 = arith.constant 3 : index
    %c0_24 = arith.constant 0 : index
    %79 = vector.load %arg1[%c0_23, %c3, %c0_24] : memref<2x8x8xf32, #tpu.memory_space<vmem>>, vector<2x1x8xf32>
    %80 = vector.shape_cast %79 : vector<2x1x8xf32> to vector<2x8xf32>
    %cst_25 = arith.constant dense<0.000000e+00> : vector<2x128xf32>
    %81 = tpu.matmul %80, %0, %cst_25 {dimension_numbers = #tpu.dot_dimension_numbers<[1], [0], [0], [1], [0, 0, 1, 1], [], []>} : vector<2x8xf32>, vector<8x128xf32>, vector<2x128xf32> -> vector<2x128xf32>
    %cst_26 = arith.constant dense<0.000000e+00> : vector<2x128xf32>
    %82 = tpu.matmul %78, %1, %cst_26 {dimension_numbers = #tpu.dot_dimension_numbers<[1], [0], [0], [1], [0, 0, 1, 1], [], []>} : vector<2x32xf32>, vector<32x128xf32>, vector<2x128xf32> -> vector<2x128xf32>
    %83 = arith.addf %81, %82 : vector<2x128xf32>
    %84 = vector.broadcast %2 : vector<1x128xf32> to vector<2x128xf32>
    %85 = arith.addf %83, %84 : vector<2x128xf32>
    %86 = math.tanh %85 : vector<2x128xf32>
    %87 = vector.broadcast %10 : vector<1x128xf32> to vector<2x128xf32>
    %88 = arith.mulf %86, %87 : vector<2x128xf32>
    %89 = vector.broadcast %13 : vector<1x128xf32> to vector<2x128xf32>
    %90 = arith.addf %88, %89 : vector<2x128xf32>
    %91 = vector.extract_strided_slice %90 {offsets = [0, 0], sizes = [2, 32], strides = [1, 1]} : vector<2x128xf32> to vector<2x32xf32>
    %92 = vector.extract_strided_slice %90 {offsets = [0, 32], sizes = [2, 32], strides = [1, 1]} : vector<2x128xf32> to vector<2x32xf32>
    %93 = vector.extract_strided_slice %90 {offsets = [0, 64], sizes = [2, 32], strides = [1, 1]} : vector<2x128xf32> to vector<2x32xf32>
    %94 = vector.extract_strided_slice %90 {offsets = [0, 96], sizes = [2, 32], strides = [1, 1]} : vector<2x128xf32> to vector<2x32xf32>
    %95 = arith.mulf %92, %76 : vector<2x32xf32>
    %96 = arith.mulf %91, %94 : vector<2x32xf32>
    %97 = arith.addf %95, %96 : vector<2x32xf32>
    %98 = math.tanh %97 : vector<2x32xf32>
    %99 = arith.mulf %93, %98 : vector<2x32xf32>
    %c0_27 = arith.constant 0 : index
    %c4 = arith.constant 4 : index
    %c0_28 = arith.constant 0 : index
    %100 = vector.load %arg1[%c0_27, %c4, %c0_28] : memref<2x8x8xf32, #tpu.memory_space<vmem>>, vector<2x1x8xf32>
    %101 = vector.shape_cast %100 : vector<2x1x8xf32> to vector<2x8xf32>
    %cst_29 = arith.constant dense<0.000000e+00> : vector<2x128xf32>
    %102 = tpu.matmul %101, %0, %cst_29 {dimension_numbers = #tpu.dot_dimension_numbers<[1], [0], [0], [1], [0, 0, 1, 1], [], []>} : vector<2x8xf32>, vector<8x128xf32>, vector<2x128xf32> -> vector<2x128xf32>
    %cst_30 = arith.constant dense<0.000000e+00> : vector<2x128xf32>
    %103 = tpu.matmul %99, %1, %cst_30 {dimension_numbers = #tpu.dot_dimension_numbers<[1], [0], [0], [1], [0, 0, 1, 1], [], []>} : vector<2x32xf32>, vector<32x128xf32>, vector<2x128xf32> -> vector<2x128xf32>
    %104 = arith.addf %102, %103 : vector<2x128xf32>
    %105 = vector.broadcast %2 : vector<1x128xf32> to vector<2x128xf32>
    %106 = arith.addf %104, %105 : vector<2x128xf32>
    %107 = math.tanh %106 : vector<2x128xf32>
    %108 = vector.broadcast %10 : vector<1x128xf32> to vector<2x128xf32>
    %109 = arith.mulf %107, %108 : vector<2x128xf32>
    %110 = vector.broadcast %13 : vector<1x128xf32> to vector<2x128xf32>
    %111 = arith.addf %109, %110 : vector<2x128xf32>
    %112 = vector.extract_strided_slice %111 {offsets = [0, 0], sizes = [2, 32], strides = [1, 1]} : vector<2x128xf32> to vector<2x32xf32>
    %113 = vector.extract_strided_slice %111 {offsets = [0, 32], sizes = [2, 32], strides = [1, 1]} : vector<2x128xf32> to vector<2x32xf32>
    %114 = vector.extract_strided_slice %111 {offsets = [0, 64], sizes = [2, 32], strides = [1, 1]} : vector<2x128xf32> to vector<2x32xf32>
    %115 = vector.extract_strided_slice %111 {offsets = [0, 96], sizes = [2, 32], strides = [1, 1]} : vector<2x128xf32> to vector<2x32xf32>
    %116 = arith.mulf %113, %97 : vector<2x32xf32>
    %117 = arith.mulf %112, %115 : vector<2x32xf32>
    %118 = arith.addf %116, %117 : vector<2x32xf32>
    %119 = math.tanh %118 : vector<2x32xf32>
    %120 = arith.mulf %114, %119 : vector<2x32xf32>
    %c0_31 = arith.constant 0 : index
    %c5 = arith.constant 5 : index
    %c0_32 = arith.constant 0 : index
    %121 = vector.load %arg1[%c0_31, %c5, %c0_32] : memref<2x8x8xf32, #tpu.memory_space<vmem>>, vector<2x1x8xf32>
    %122 = vector.shape_cast %121 : vector<2x1x8xf32> to vector<2x8xf32>
    %cst_33 = arith.constant dense<0.000000e+00> : vector<2x128xf32>
    %123 = tpu.matmul %122, %0, %cst_33 {dimension_numbers = #tpu.dot_dimension_numbers<[1], [0], [0], [1], [0, 0, 1, 1], [], []>} : vector<2x8xf32>, vector<8x128xf32>, vector<2x128xf32> -> vector<2x128xf32>
    %cst_34 = arith.constant dense<0.000000e+00> : vector<2x128xf32>
    %124 = tpu.matmul %120, %1, %cst_34 {dimension_numbers = #tpu.dot_dimension_numbers<[1], [0], [0], [1], [0, 0, 1, 1], [], []>} : vector<2x32xf32>, vector<32x128xf32>, vector<2x128xf32> -> vector<2x128xf32>
    %125 = arith.addf %123, %124 : vector<2x128xf32>
    %126 = vector.broadcast %2 : vector<1x128xf32> to vector<2x128xf32>
    %127 = arith.addf %125, %126 : vector<2x128xf32>
    %128 = math.tanh %127 : vector<2x128xf32>
    %129 = vector.broadcast %10 : vector<1x128xf32> to vector<2x128xf32>
    %130 = arith.mulf %128, %129 : vector<2x128xf32>
    %131 = vector.broadcast %13 : vector<1x128xf32> to vector<2x128xf32>
    %132 = arith.addf %130, %131 : vector<2x128xf32>
    %133 = vector.extract_strided_slice %132 {offsets = [0, 0], sizes = [2, 32], strides = [1, 1]} : vector<2x128xf32> to vector<2x32xf32>
    %134 = vector.extract_strided_slice %132 {offsets = [0, 32], sizes = [2, 32], strides = [1, 1]} : vector<2x128xf32> to vector<2x32xf32>
    %135 = vector.extract_strided_slice %132 {offsets = [0, 64], sizes = [2, 32], strides = [1, 1]} : vector<2x128xf32> to vector<2x32xf32>
    %136 = vector.extract_strided_slice %132 {offsets = [0, 96], sizes = [2, 32], strides = [1, 1]} : vector<2x128xf32> to vector<2x32xf32>
    %137 = arith.mulf %134, %118 : vector<2x32xf32>
    %138 = arith.mulf %133, %136 : vector<2x32xf32>
    %139 = arith.addf %137, %138 : vector<2x32xf32>
    %140 = math.tanh %139 : vector<2x32xf32>
    %141 = arith.mulf %135, %140 : vector<2x32xf32>
    %c0_35 = arith.constant 0 : index
    %c6 = arith.constant 6 : index
    %c0_36 = arith.constant 0 : index
    %142 = vector.load %arg1[%c0_35, %c6, %c0_36] : memref<2x8x8xf32, #tpu.memory_space<vmem>>, vector<2x1x8xf32>
    %143 = vector.shape_cast %142 : vector<2x1x8xf32> to vector<2x8xf32>
    %cst_37 = arith.constant dense<0.000000e+00> : vector<2x128xf32>
    %144 = tpu.matmul %143, %0, %cst_37 {dimension_numbers = #tpu.dot_dimension_numbers<[1], [0], [0], [1], [0, 0, 1, 1], [], []>} : vector<2x8xf32>, vector<8x128xf32>, vector<2x128xf32> -> vector<2x128xf32>
    %cst_38 = arith.constant dense<0.000000e+00> : vector<2x128xf32>
    %145 = tpu.matmul %141, %1, %cst_38 {dimension_numbers = #tpu.dot_dimension_numbers<[1], [0], [0], [1], [0, 0, 1, 1], [], []>} : vector<2x32xf32>, vector<32x128xf32>, vector<2x128xf32> -> vector<2x128xf32>
    %146 = arith.addf %144, %145 : vector<2x128xf32>
    %147 = vector.broadcast %2 : vector<1x128xf32> to vector<2x128xf32>
    %148 = arith.addf %146, %147 : vector<2x128xf32>
    %149 = math.tanh %148 : vector<2x128xf32>
    %150 = vector.broadcast %10 : vector<1x128xf32> to vector<2x128xf32>
    %151 = arith.mulf %149, %150 : vector<2x128xf32>
    %152 = vector.broadcast %13 : vector<1x128xf32> to vector<2x128xf32>
    %153 = arith.addf %151, %152 : vector<2x128xf32>
    %154 = vector.extract_strided_slice %153 {offsets = [0, 0], sizes = [2, 32], strides = [1, 1]} : vector<2x128xf32> to vector<2x32xf32>
    %155 = vector.extract_strided_slice %153 {offsets = [0, 32], sizes = [2, 32], strides = [1, 1]} : vector<2x128xf32> to vector<2x32xf32>
    %156 = vector.extract_strided_slice %153 {offsets = [0, 64], sizes = [2, 32], strides = [1, 1]} : vector<2x128xf32> to vector<2x32xf32>
    %157 = vector.extract_strided_slice %153 {offsets = [0, 96], sizes = [2, 32], strides = [1, 1]} : vector<2x128xf32> to vector<2x32xf32>
    %158 = arith.mulf %155, %139 : vector<2x32xf32>
    %159 = arith.mulf %154, %157 : vector<2x32xf32>
    %160 = arith.addf %158, %159 : vector<2x32xf32>
    %161 = math.tanh %160 : vector<2x32xf32>
    %162 = arith.mulf %156, %161 : vector<2x32xf32>
    %c0_39 = arith.constant 0 : index
    %c7 = arith.constant 7 : index
    %c0_40 = arith.constant 0 : index
    %163 = vector.load %arg1[%c0_39, %c7, %c0_40] : memref<2x8x8xf32, #tpu.memory_space<vmem>>, vector<2x1x8xf32>
    %164 = vector.shape_cast %163 : vector<2x1x8xf32> to vector<2x8xf32>
    %cst_41 = arith.constant dense<0.000000e+00> : vector<2x128xf32>
    %165 = tpu.matmul %164, %0, %cst_41 {dimension_numbers = #tpu.dot_dimension_numbers<[1], [0], [0], [1], [0, 0, 1, 1], [], []>} : vector<2x8xf32>, vector<8x128xf32>, vector<2x128xf32> -> vector<2x128xf32>
    %cst_42 = arith.constant dense<0.000000e+00> : vector<2x128xf32>
    %166 = tpu.matmul %162, %1, %cst_42 {dimension_numbers = #tpu.dot_dimension_numbers<[1], [0], [0], [1], [0, 0, 1, 1], [], []>} : vector<2x32xf32>, vector<32x128xf32>, vector<2x128xf32> -> vector<2x128xf32>
    %167 = arith.addf %165, %166 : vector<2x128xf32>
    %168 = vector.broadcast %2 : vector<1x128xf32> to vector<2x128xf32>
    %169 = arith.addf %167, %168 : vector<2x128xf32>
    %170 = math.tanh %169 : vector<2x128xf32>
    %171 = vector.broadcast %10 : vector<1x128xf32> to vector<2x128xf32>
    %172 = arith.mulf %170, %171 : vector<2x128xf32>
    %173 = vector.broadcast %13 : vector<1x128xf32> to vector<2x128xf32>
    %174 = arith.addf %172, %173 : vector<2x128xf32>
    %175 = vector.extract_strided_slice %174 {offsets = [0, 0], sizes = [2, 32], strides = [1, 1]} : vector<2x128xf32> to vector<2x32xf32>
    %176 = vector.extract_strided_slice %174 {offsets = [0, 32], sizes = [2, 32], strides = [1, 1]} : vector<2x128xf32> to vector<2x32xf32>
    %177 = vector.extract_strided_slice %174 {offsets = [0, 64], sizes = [2, 32], strides = [1, 1]} : vector<2x128xf32> to vector<2x32xf32>
    %178 = vector.extract_strided_slice %174 {offsets = [0, 96], sizes = [2, 32], strides = [1, 1]} : vector<2x128xf32> to vector<2x32xf32>
    %179 = arith.mulf %176, %160 : vector<2x32xf32>
    %180 = arith.mulf %175, %178 : vector<2x32xf32>
    %181 = arith.addf %179, %180 : vector<2x32xf32>
    %182 = math.tanh %181 : vector<2x32xf32>
    %183 = arith.mulf %177, %182 : vector<2x32xf32>
    %184 = vector.broadcast %3 : vector<1x32xf32> to vector<2x32xf32>
    %185 = arith.mulf %183, %184 : vector<2x32xf32>
    %cst_43 = arith.constant dense<0.000000e+00> : vector<2xf32>
    %186 = vector.multi_reduction <add>, %185, %cst_43 [1] : vector<2x32xf32> to vector<2xf32>
    %187 = vector.shape_cast %186 : vector<2xf32> to vector<2x1xf32>
    %188 = vector.broadcast %4 : vector<1x1xf32> to vector<2x1xf32>
    %189 = arith.addf %187, %188 : vector<2x1xf32>
    %c0_44 = arith.constant 0 : index
    %c0_45 = arith.constant 0 : index
    %190 = vector.load %arg3[%c0_44, %c0_45] : memref<2x1xf32, #tpu.memory_space<vmem>>, vector<2x1xf32>
    tpu.vector_store %arg3[%c0_44, %c0_45], %189 {strides = array<i32>} : memref<2x1xf32, #tpu.memory_space<vmem>>, vector<2x1xf32>,
    return
  }
  func.func @transform_0(%arg0: i32) -> (i32, i32, i32) {
    %c0_i32 = arith.constant 0 : i32
    %c0_i32_0 = arith.constant 0 : i32
    %c0_i32_1 = arith.constant 0 : i32
    return %arg0, %c0_i32, %c0_i32_0 : i32, i32, i32
  }
  func.func @transform_1(%arg0: i32) -> (i32, i32) {
    %c0_i32 = arith.constant 0 : i32
    %c0_i32_0 = arith.constant 0 : i32
    %c0_i32_1 = arith.constant 0 : i32
    return %c0_i32, %c0_i32_0 : i32, i32
  }
  func.func @transform_2(%arg0: i32) -> (i32, i32) {
    %c0_i32 = arith.constant 0 : i32
    %c0_i32_0 = arith.constant 0 : i32
    return %arg0, %c0_i32 : i32, i32
  }
}

</mosaic_0001>

<llo_original>
// kernel: lstm_model_forward.1
$region0: #{lstm_model_forward.1}
  #allocation0 [shape = 'u32[]', space=smem, size = 0x4, offset = 0x4, fixed_abs, tag = 'smem constant byte address 0x4 - core index']
  #allocation1 [shape = 'u32[72,128]{1,0:T(1,128)}', space=vmem, size = 0x9000, scoped, tag = 'internal scratch']
  %s0 = inlined_call_operand.hbm [shape: f32[2,8,8], index: 0, kind: input, shape index: {}]
  %s1 = inlined_call_operand.hbm [shape: f32[42,128], index: 1, kind: input, shape index: {}]
  %s2 = inlined_call_operand.vmem [shape: f32[2,1], index: 2, kind: output, shape index: {}]
  %s3 = sld [smem:[#allocation0]]
  $region26: #{lstm_model_forward.1} parent=0
    _
  %s5 = ssub.s32 1, %s3
  %s6 = scalar_select 0, %s5, %s3
  $region1: #{lstm_model_forward.1} parent=0
    #allocation2 [shape = 'u8[8192]{0}', space=vmem, size = 0x2000, scoped, tag = 'input window, operand 0, single buffered']
    #allocation3 [shape = 's32[1]{0}', space=sflag, size = 0x4, scoped, tag = 'scoped memory for lstm_model_forward.1']
    #allocation4 [shape = 'u8[24576]{0}', space=vmem, size = 0x6000, scoped, tag = 'input window, operand 1, single buffered']
    #allocation5 [shape = 's32[1]{0}', space=sflag, size = 0x4, scoped, tag = 'scoped memory for lstm_model_forward.1']
    %7 = vsyncpa [#allocation3], 0
    %8 = vsyncpa [#allocation5], 0
    // Predicated region
    $region2: #{lstm_model_forward.1} parent=1 // pred_check
      _
    $region3: #{lstm_model_forward.1} parent=1 // pred_check_branch
      %10 = sbr.rel (0) target = $region5
    $region4: #{lstm_model_forward.1} parent=1 // pred_region
      %12 = vsyncadd [#allocation3], 0
      %s13 = sshll.u32 %s0, 4
      %s14 = int_to_ptr.hbm [resolvable:$true] %s13
      %s15 = sshll.u32 [#allocation2], 4
      %s16 = int_to_ptr.vmem [resolvable:$true] %s15
      %21 = dma.hbm_to_vmem [thread:$0]  %s14, 256, %s16, [#allocation3], 128, 128, 8
    $region5: #{lstm_model_forward.1} parent=1 // pred_fallthru
      _
    // Predicated region
    $region6: #{lstm_model_forward.1} parent=1 // pred_check
      _
    $region7: #{lstm_model_forward.1} parent=1 // pred_check_branch
      %23 = sbr.rel (0) target = $region9
    $region8: #{lstm_model_forward.1} parent=1 // pred_region
      %25 = vsyncadd [#allocation5], 0
      %s26 = sshll.u32 %s1, 4
      %s27 = int_to_ptr.hbm [resolvable:$true] %s26
      %s28 = sshll.u32 [#allocation4], 4
      %s29 = int_to_ptr.vmem [resolvable:$true] %s28
      %34 = dma.hbm_to_vmem [thread:$0]  %s27, 768, %s29, [#allocation5], 128, 128, 8
    $region9: #{lstm_model_forward.1} parent=1 // pred_fallthru
      _
    // Predicated region
    $region10: #{lstm_model_forward.1} parent=1 // pred_check
      _
    $region11: #{lstm_model_forward.1} parent=1 // pred_check_branch
      %36 = sbr.rel (0) target = $region13
    $region12: #{lstm_model_forward.1} parent=1 // pred_region
      %38 = dma.done [#allocation3], 256
    $region13: #{lstm_model_forward.1} parent=1 // pred_fallthru
      _
    // Predicated region
    $region14: #{lstm_model_forward.1} parent=1 // pred_check
      _
    $region15: #{lstm_model_forward.1} parent=1 // pred_check_branch
      %40 = sbr.rel (0) target = $region17
    $region16: #{lstm_model_forward.1} parent=1 // pred_region
      %42 = dma.done [#allocation5], 768
    $region17: #{lstm_model_forward.1} parent=1 // pred_fallthru
      _
    %v43 = vld [vmem:[#allocation4] sm:$0xff]
    %v44 = vld [vmem:[#allocation4 + $0x8] sm:$0xff]
    %v45 = vld [vmem:[#allocation4 + $0x10] sm:$0xff]
    %v46 = vld [vmem:[#allocation4 + $0x18] sm:$0xff]
    %v47 = vld [vmem:[#allocation4 + $0x20] sm:$0xff]
    %v48 = vld [vmem:[#allocation4 + $0x28] sm:$0x1]
    %v49 = vld [vmem:[#allocation4 + $0x29] sm:$0x1]
    %v50 = vlaneseq
    %v51 = vand.u32 %v50, 127
    %vm52 = vcmp.ge.s32.totalorder %v51, 96
    %v53 = vsel %vm52, 1.0, 0.5
    %v54 = vsel %vm52, 0.0, 0.5
    %v55 = vld [vmem:[#allocation2] sm:$0x1]
    %v56 = vld [vmem:[#allocation2 + $0x8] sm:$0x1]
    %vm57 = vcmask 261120
    %v59 = vsel %vm57, 0.0, 0
    %61 = vmatpush.msra.mxu0 0.0
    %62 = vmatpush.msra.mxu0 0.0
    %63 = vmatpush.msra.mxu0 0.0
    %64 = vmatpush.msra.mxu0 0.0
    %65 = vmatpush.msra.mxu0 0.0
    %66 = vmatpush.msra.mxu0 0.0
    %67 = vmatpush.msra.mxu0 0.0
    %68 = vmatpush.msra.mxu0 0.0
    %69 = vmatpush.msra.mxu0 0.0
    %70 = vmatpush.msra.mxu0 0.0
    %71 = vmatpush.msra.mxu0 0.0
    %72 = vmatpush.msra.mxu0 0.0
    %73 = vmatpush.msra.mxu0 %v47
    %74 = vmatpush.msra.mxu0 %v46
    %75 = vmatpush.msra.mxu0 %v45
    %76 = vmatpush.msra.mxu0 %v44
    %77 = vmatmul.f32.gmra.mxu0 %v59
    %v78 = vpop.f32.mrf.mxu0
    %v79 = vadd.f32 0.0, %v78
    %80 = vdwg.mxu0
    %v83 = vrot.slane %v56, 7
    %vm84 = vcmask 1041409
    %v85 = vsel %vm84, %v83, %v55
    %vm86 = vcmask 64512
    %v87 = vsel %vm86, %v85, 0
    %89 = vmatpush.msra.mxu0 0.0
    %90 = vmatpush.msra.mxu0 0.0
    %91 = vmatpush.msra.mxu0 0.0
    %92 = vmatpush.msra.mxu0 0.0
    %93 = vmatpush.msra.mxu0 0.0
    %94 = vmatpush.msra.mxu0 0.0
    %95 = vmatpush.msra.mxu0 0.0
    %96 = vmatpush.msra.mxu0 0.0
    %97 = vmatpush.msra.mxu0 0.0
    %98 = vmatpush.msra.mxu0 0.0
    %99 = vmatpush.msra.mxu0 0.0
    %100 = vmatpush.msra.mxu0 0.0
    %101 = vmatpush.msra.mxu0 0.0
    %102 = vmatpush.msra.mxu0 0.0
    %103 = vmatpush.msra.mxu0 0.0
    %104 = vmatpush.msra.mxu0 %v43
    %105 = vmatmul.f32.gmra.mxu0 %v87
    %v106 = vpop.f32.mrf.mxu0
    %v107 = vadd.f32 %v79, %v106
    %108 = vdwg.mxu0
    %v109 = vperm.slane %v48, 0
    %v110 = vadd.f32 %v107, %v109
    %v111 = vtanh.pop %v110
    %v112 = vmul.f32 %v111, %v53
    %v113 = vadd.f32 %v112, %v54
    %v114 = vmul.f32 %v113, 0.0
    %116 = vrot.lane.b32.xlu0 %v113, 32
    %v117 = vpop.permute.xlu0 %116
    %v119 = vmul.f32 %v113, %v117
    %121 = vrot.lane.b32.xlu0 %v119, 32
    %v122 = vpop.permute.xlu0 %121
    %v124 = vadd.f32 %v114, %v122
    %v125 = vtanh.pop %v124
    %127 = vrot.lane.b32.xlu0 %v125, 32
    %v128 = vpop.permute.xlu0 %127
    %v130 = vmul.f32 %v113, %v128
    %v131 = vld [vmem:[#allocation2 + $0x1] sm:$0x1]
    %v132 = vld [vmem:[#allocation2 + $0x9] sm:$0x1]
    %134 = vrot.lane.b32.xlu0 %v130, 64
    %v135 = vpop.permute.xlu0 %134
    %v136 = vsel %vm57, %v135, 0
    %138 = vmatpush.msra.mxu0 0.0
    %139 = vmatpush.msra.mxu0 0.0
    %140 = vmatpush.msra.mxu0 0.0
    %141 = vmatpush.msra.mxu0 0.0
    %142 = vmatpush.msra.mxu0 0.0
    %143 = vmatpush.msra.mxu0 0.0
    %144 = vmatpush.msra.mxu0 0.0
    %145 = vmatpush.msra.mxu0 0.0
    %146 = vmatpush.msra.mxu0 0.0
    %147 = vmatpush.msra.mxu0 0.0
    %148 = vmatpush.msra.mxu0 0.0
    %149 = vmatpush.msra.mxu0 0.0
    %150 = vmatpush.msra.mxu0 %v47
    %151 = vmatpush.msra.mxu0 %v46
    %152 = vmatpush.msra.mxu0 %v45
    %153 = vmatpush.msra.mxu0 %v44
    %154 = vmatmul.f32.gmra.mxu0 %v136
    %v155 = vpop.f32.mrf.mxu0
    %v156 = vadd.f32 0.0, %v155
    %157 = vdwg.mxu0
    %v160 = vrot.slane %v132, 7
    %v161 = vsel %vm84, %v160, %v131
    %v162 = vsel %vm86, %v161, 0
    %164 = vmatpush.msra.mxu0 0.0
    %165 = vmatpush.msra.mxu0 0.0
    %166 = vmatpush.msra.mxu0 0.0
    %167 = vmatpush.msra.mxu0 0.0
    %168 = vmatpush.msra.mxu0 0.0
    %169 = vmatpush.msra.mxu0 0.0
    %170 = vmatpush.msra.mxu0 0.0
    %171 = vmatpush.msra.mxu0 0.0
    %172 = vmatpush.msra.mxu0 0.0
    %173 = vmatpush.msra.mxu0 0.0
    %174 = vmatpush.msra.mxu0 0.0
    %175 = vmatpush.msra.mxu0 0.0
    %176 = vmatpush.msra.mxu0 0.0
    %177 = vmatpush.msra.mxu0 0.0
    %178 = vmatpush.msra.mxu0 0.0
    %179 = vmatpush.msra.mxu0 %v43
    %180 = vmatmul.f32.gmra.mxu0 %v162
    %v181 = vpop.f32.mrf.mxu0
    %v182 = vadd.f32 %v156, %v181
    %183 = vdwg.mxu0
    %v184 = vadd.f32 %v182, %v109
    %v185 = vtanh.pop %v184
    %v186 = vmul.f32 %v185, %v53
    %v187 = vadd.f32 %v186, %v54
    %v188 = vmul.f32 %v187, %v124
    %190 = vrot.lane.b32.xlu0 %v187, 32
    %v191 = vpop.permute.xlu0 %190
    %v193 = vmul.f32 %v187, %v191
    %195 = vrot.lane.b32.xlu0 %v193, 32
    %v196 = vpop.permute.xlu0 %195
    %v198 = vadd.f32 %v188, %v196
    %v199 = vtanh.pop %v198
    %201 = vrot.lane.b32.xlu0 %v199, 32
    %v202 = vpop.permute.xlu0 %201
    %v204 = vmul.f32 %v187, %v202
    %v205 = vld [vmem:[#allocation2 + $0x2] sm:$0x1]
    %v206 = vld [vmem:[#allocation2 + $0xa] sm:$0x1]
    %208 = vrot.lane.b32.xlu0 %v204, 64
    %v209 = vpop.permute.xlu0 %208
    %v210 = vsel %vm57, %v209, 0
    %212 = vmatpush.msra.mxu0 0.0
    %213 = vmatpush.msra.mxu0 0.0
    %214 = vmatpush.msra.mxu0 0.0
    %215 = vmatpush.msra.mxu0 0.0
    %216 = vmatpush.msra.mxu0 0.0
    %217 = vmatpush.msra.mxu0 0.0
    %218 = vmatpush.msra.mxu0 0.0
    %219 = vmatpush.msra.mxu0 0.0
    %220 = vmatpush.msra.mxu0 0.0
    %221 = vmatpush.msra.mxu0 0.0
    %222 = vmatpush.msra.mxu0 0.0
    %223 = vmatpush.msra.mxu0 0.0
    %224 = vmatpush.msra.mxu0 %v47
    %225 = vmatpush.msra.mxu0 %v46
    %226 = vmatpush.msra.mxu0 %v45
    %227 = vmatpush.msra.mxu0 %v44
    %228 = vmatmul.f32.gmra.mxu0 %v210
    %v229 = vpop.f32.mrf.mxu0
    %v230 = vadd.f32 0.0, %v229
    %231 = vdwg.mxu0
    %v234 = vrot.slane %v206, 7
    %v235 = vsel %vm84, %v234, %v205
    %v236 = vsel %vm86, %v235, 0
    %238 = vmatpush.msra.mxu0 0.0
    %239 = vmatpush.msra.mxu0 0.0
    %240 = vmatpush.msra.mxu0 0.0
    %241 = vmatpush.msra.mxu0 0.0
    %242 = vmatpush.msra.mxu0 0.0
    %243 = vmatpush.msra.mxu0 0.0
    %244 = vmatpush.msra.mxu0 0.0
    %245 = vmatpush.msra.mxu0 0.0
    %246 = vmatpush.msra.mxu0 0.0
    %247 = vmatpush.msra.mxu0 0.0
    %248 = vmatpush.msra.mxu0 0.0
    %249 = vmatpush.msra.mxu0 0.0
    %250 = vmatpush.msra.mxu0 0.0
    %251 = vmatpush.msra.mxu0 0.0
    %252 = vmatpush.msra.mxu0 0.0
    %253 = vmatpush.msra.mxu0 %v43
    %254 = vmatmul.f32.gmra.mxu0 %v236
    %v255 = vpop.f32.mrf.mxu0
    %v256 = vadd.f32 %v230, %v255
    %257 = vdwg.mxu0
    %v258 = vadd.f32 %v256, %v109
    %v259 = vtanh.pop %v258
    %v260 = vmul.f32 %v259, %v53
    %v261 = vadd.f32 %v260, %v54
    %v262 = vmul.f32 %v261, %v198
    %264 = vrot.lane.b32.xlu0 %v261, 32
    %v265 = vpop.permute.xlu0 %264
    %v267 = vmul.f32 %v261, %v265
    %269 = vrot.lane.b32.xlu0 %v267, 32
    %v270 = vpop.permute.xlu0 %269
    %v272 = vadd.f32 %v262, %v270
    %v273 = vtanh.pop %v272
    %275 = vrot.lane.b32.xlu0 %v273, 32
    %v276 = vpop.permute.xlu0 %275
    %v278 = vmul.f32 %v261, %v276
    %v279 = vld [vmem:[#allocation2 + $0x3] sm:$0x1]
    %v280 = vld [vmem:[#allocation2 + $0xb] sm:$0x1]
    %282 = vrot.lane.b32.xlu0 %v278, 64
    %v283 = vpop.permute.xlu0 %282
    %v284 = vsel %vm57, %v283, 0
    %286 = vmatpush.msra.mxu0 0.0
    %287 = vmatpush.msra.mxu0 0.0
    %288 = vmatpush.msra.mxu0 0.0
    %289 = vmatpush.msra.mxu0 0.0
    %290 = vmatpush.msra.mxu0 0.0
    %291 = vmatpush.msra.mxu0 0.0
    %292 = vmatpush.msra.mxu0 0.0
    %293 = vmatpush.msra.mxu0 0.0
    %294 = vmatpush.msra.mxu0 0.0
    %295 = vmatpush.msra.mxu0 0.0
    %296 = vmatpush.msra.mxu0 0.0
    %297 = vmatpush.msra.mxu0 0.0
    %298 = vmatpush.msra.mxu0 %v47
    %299 = vmatpush.msra.mxu0 %v46
    %300 = vmatpush.msra.mxu0 %v45
    %301 = vmatpush.msra.mxu0 %v44
    %302 = vmatmul.f32.gmra.mxu0 %v284
    %v303 = vpop.f32.mrf.mxu0
    %v304 = vadd.f32 0.0, %v303
    %305 = vdwg.mxu0
    %v308 = vrot.slane %v280, 7
    %v309 = vsel %vm84, %v308, %v279
    %v310 = vsel %vm86, %v309, 0
    %312 = vmatpush.msra.mxu0 0.0
    %313 = vmatpush.msra.mxu0 0.0
    %314 = vmatpush.msra.mxu0 0.0
    %315 = vmatpush.msra.mxu0 0.0
    %316 = vmatpush.msra.mxu0 0.0
    %317 = vmatpush.msra.mxu0 0.0
    %318 = vmatpush.msra.mxu0 0.0
    %319 = vmatpush.msra.mxu0 0.0
    %320 = vmatpush.msra.mxu0 0.0
    %321 = vmatpush.msra.mxu0 0.0
    %322 = vmatpush.msra.mxu0 0.0
    %323 = vmatpush.msra.mxu0 0.0
    %324 = vmatpush.msra.mxu0 0.0
    %325 = vmatpush.msra.mxu0 0.0
    %326 = vmatpush.msra.mxu0 0.0
    %327 = vmatpush.msra.mxu0 %v43
    %328 = vmatmul.f32.gmra.mxu0 %v310
    %v329 = vpop.f32.mrf.mxu0
    %v330 = vadd.f32 %v304, %v329
    %331 = vdwg.mxu0
    %v332 = vadd.f32 %v330, %v109
    %v333 = vtanh.pop %v332
    %v334 = vmul.f32 %v333, %v53
    %v335 = vadd.f32 %v334, %v54
    %v336 = vmul.f32 %v335, %v272
    %338 = vrot.lane.b32.xlu0 %v335, 32
    %v339 = vpop.permute.xlu0 %338
    %v341 = vmul.f32 %v335, %v339
    %343 = vrot.lane.b32.xlu0 %v341, 32
    %v344 = vpop.permute.xlu0 %343
    %v346 = vadd.f32 %v336, %v344
    %v347 = vtanh.pop %v346
    %349 = vrot.lane.b32.xlu0 %v347, 32
    %v350 = vpop.permute.xlu0 %349
    %v352 = vmul.f32 %v335, %v350
    %v353 = vld [vmem:[#allocation2 + $0x4] sm:$0x1]
    %v354 = vld [vmem:[#allocation2 + $0xc] sm:$0x1]
    %356 = vrot.lane.b32.xlu0 %v352, 64
    %v357 = vpop.permute.xlu0 %356
    %v358 = vsel %vm57, %v357, 0
    %360 = vmatpush.msra.mxu0 0.0
    %361 = vmatpush.msra.mxu0 0.0
    %362 = vmatpush.msra.mxu0 0.0
    %363 = vmatpush.msra.mxu0 0.0
    %364 = vmatpush.msra.mxu0 0.0
    %365 = vmatpush.msra.mxu0 0.0
    %366 = vmatpush.msra.mxu0 0.0
    %367 = vmatpush.msra.mxu0 0.0
    %368 = vmatpush.msra.mxu0 0.0
    %369 = vmatpush.msra.mxu0 0.0
    %370 = vmatpush.msra.mxu0 0.0
    %371 = vmatpush.msra.mxu0 0.0
    %372 = vmatpush.msra.mxu0 %v47
    %373 = vmatpush.msra.mxu0 %v46
    %374 = vmatpush.msra.mxu0 %v45
    %375 = vmatpush.msra.mxu0 %v44
    %376 = vmatmul.f32.gmra.mxu0 %v358
    %v377 = vpop.f32.mrf.mxu0
    %v378 = vadd.f32 0.0, %v377
    %379 = vdwg.mxu0
    %v382 = vrot.slane %v354, 7
    %v383 = vsel %vm84, %v382, %v353
    %v384 = vsel %vm86, %v383, 0
    %386 = vmatpush.msra.mxu0 0.0
    %387 = vmatpush.msra.mxu0 0.0
    %388 = vmatpush.msra.mxu0 0.0
    %389 = vmatpush.msra.mxu0 0.0
    %390 = vmatpush.msra.mxu0 0.0
    %391 = vmatpush.msra.mxu0 0.0
    %392 = vmatpush.msra.mxu0 0.0
    %393 = vmatpush.msra.mxu0 0.0
    %394 = vmatpush.msra.mxu0 0.0
    %395 = vmatpush.msra.mxu0 0.0
    %396 = vmatpush.msra.mxu0 0.0
    %397 = vmatpush.msra.mxu0 0.0
    %398 = vmatpush.msra.mxu0 0.0
    %399 = vmatpush.msra.mxu0 0.0
    %400 = vmatpush.msra.mxu0 0.0
    %401 = vmatpush.msra.mxu0 %v43
    %402 = vmatmul.f32.gmra.mxu0 %v384
    %v403 = vpop.f32.mrf.mxu0
    %v404 = vadd.f32 %v378, %v403
    %405 = vdwg.mxu0
    %v406 = vadd.f32 %v404, %v109
    %v407 = vtanh.pop %v406
    %v408 = vmul.f32 %v407, %v53
    %v409 = vadd.f32 %v408, %v54
    %v410 = vmul.f32 %v409, %v346
    %412 = vrot.lane.b32.xlu0 %v409, 32
    %v413 = vpop.permute.xlu0 %412
    %v415 = vmul.f32 %v409, %v413
    %417 = vrot.lane.b32.xlu0 %v415, 32
    %v418 = vpop.permute.xlu0 %417
    %v420 = vadd.f32 %v410, %v418
    %v421 = vtanh.pop %v420
    %423 = vrot.lane.b32.xlu0 %v421, 32
    %v424 = vpop.permute.xlu0 %423
    %v426 = vmul.f32 %v409, %v424
    %v427 = vld [vmem:[#allocation2 + $0x5] sm:$0x1]
    %v428 = vld [vmem:[#allocation2 + $0xd] sm:$0x1]
    %430 = vrot.lane.b32.xlu0 %v426, 64
    %v431 = vpop.permute.xlu0 %430
    %v432 = vsel %vm57, %v431, 0
    %434 = vmatpush.msra.mxu0 0.0
    %435 = vmatpush.msra.mxu0 0.0
    %436 = vmatpush.msra.mxu0 0.0
    %437 = vmatpush.msra.mxu0 0.0
    %438 = vmatpush.msra.mxu0 0.0
    %439 = vmatpush.msra.mxu0 0.0
    %440 = vmatpush.msra.mxu0 0.0
    %441 = vmatpush.msra.mxu0 0.0
    %442 = vmatpush.msra.mxu0 0.0
    %443 = vmatpush.msra.mxu0 0.0
    %444 = vmatpush.msra.mxu0 0.0
    %445 = vmatpush.msra.mxu0 0.0
    %446 = vmatpush.msra.mxu0 %v47
    %447 = vmatpush.msra.mxu0 %v46
    %448 = vmatpush.msra.mxu0 %v45
    %449 = vmatpush.msra.mxu0 %v44
    %450 = vmatmul.f32.gmra.mxu0 %v432
    %v451 = vpop.f32.mrf.mxu0
    %v452 = vadd.f32 0.0, %v451
    %453 = vdwg.mxu0
    %v456 = vrot.slane %v428, 7
    %v457 = vsel %vm84, %v456, %v427
    %v458 = vsel %vm86, %v457, 0
    %460 = vmatpush.msra.mxu0 0.0
    %461 = vmatpush.msra.mxu0 0.0
    %462 = vmatpush.msra.mxu0 0.0
    %463 = vmatpush.msra.mxu0 0.0
    %464 = vmatpush.msra.mxu0 0.0
    %465 = vmatpush.msra.mxu0 0.0
    %466 = vmatpush.msra.mxu0 0.0
    %467 = vmatpush.msra.mxu0 0.0
    %468 = vmatpush.msra.mxu0 0.0
    %469 = vmatpush.msra.mxu0 0.0
    %470 = vmatpush.msra.mxu0 0.0
    %471 = vmatpush.msra.mxu0 0.0
    %472 = vmatpush.msra.mxu0 0.0
    %473 = vmatpush.msra.mxu0 0.0
    %474 = vmatpush.msra.mxu0 0.0
    %475 = vmatpush.msra.mxu0 %v43
    %476 = vmatmul.f32.gmra.mxu0 %v458
    %v477 = vpop.f32.mrf.mxu0
    %v478 = vadd.f32 %v452, %v477
    %479 = vdwg.mxu0
    %v480 = vadd.f32 %v478, %v109
    %v481 = vtanh.pop %v480
    %v482 = vmul.f32 %v481, %v53
    %v483 = vadd.f32 %v482, %v54
    %v484 = vmul.f32 %v483, %v420
    %486 = vrot.lane.b32.xlu0 %v483, 32
    %v487 = vpop.permute.xlu0 %486
    %v489 = vmul.f32 %v483, %v487
    %491 = vrot.lane.b32.xlu0 %v489, 32
    %v492 = vpop.permute.xlu0 %491
    %v494 = vadd.f32 %v484, %v492
    %v495 = vtanh.pop %v494
    %497 = vrot.lane.b32.xlu0 %v495, 32
    %v498 = vpop.permute.xlu0 %497
    %v500 = vmul.f32 %v483, %v498
    %v501 = vld [vmem:[#allocation2 + $0x6] sm:$0x1]
    %v502 = vld [vmem:[#allocation2 + $0xe] sm:$0x1]
    %504 = vrot.lane.b32.xlu0 %v500, 64
    %v505 = vpop.permute.xlu0 %504
    %v506 = vsel %vm57, %v505, 0
    %508 = vmatpush.msra.mxu0 0.0
    %509 = vmatpush.msra.mxu0 0.0
    %510 = vmatpush.msra.mxu0 0.0
    %511 = vmatpush.msra.mxu0 0.0
    %512 = vmatpush.msra.mxu0 0.0
    %513 = vmatpush.msra.mxu0 0.0
    %514 = vmatpush.msra.mxu0 0.0
    %515 = vmatpush.msra.mxu0 0.0
    %516 = vmatpush.msra.mxu0 0.0
    %517 = vmatpush.msra.mxu0 0.0
    %518 = vmatpush.msra.mxu0 0.0
    %519 = vmatpush.msra.mxu0 0.0
    %520 = vmatpush.msra.mxu0 %v47
    %521 = vmatpush.msra.mxu0 %v46
    %522 = vmatpush.msra.mxu0 %v45
    %523 = vmatpush.msra.mxu0 %v44
    %524 = vmatmul.f32.gmra.mxu0 %v506
    %v525 = vpop.f32.mrf.mxu0
    %v526 = vadd.f32 0.0, %v525
    %527 = vdwg.mxu0
    %v530 = vrot.slane %v502, 7
    %v531 = vsel %vm84, %v530, %v501
    %v532 = vsel %vm86, %v531, 0
    %534 = vmatpush.msra.mxu0 0.0
    %535 = vmatpush.msra.mxu0 0.0
    %536 = vmatpush.msra.mxu0 0.0
    %537 = vmatpush.msra.mxu0 0.0
    %538 = vmatpush.msra.mxu0 0.0
    %539 = vmatpush.msra.mxu0 0.0
    %540 = vmatpush.msra.mxu0 0.0
    %541 = vmatpush.msra.mxu0 0.0
    %542 = vmatpush.msra.mxu0 0.0
    %543 = vmatpush.msra.mxu0 0.0
    %544 = vmatpush.msra.mxu0 0.0
    %545 = vmatpush.msra.mxu0 0.0
    %546 = vmatpush.msra.mxu0 0.0
    %547 = vmatpush.msra.mxu0 0.0
    %548 = vmatpush.msra.mxu0 0.0
    %549 = vmatpush.msra.mxu0 %v43
    %550 = vmatmul.f32.gmra.mxu0 %v532
    %v551 = vpop.f32.mrf.mxu0
    %v552 = vadd.f32 %v526, %v551
    %553 = vdwg.mxu0
    %v554 = vadd.f32 %v552, %v109
    %v555 = vtanh.pop %v554
    %v556 = vmul.f32 %v555, %v53
    %v557 = vadd.f32 %v556, %v54
    %v558 = vmul.f32 %v557, %v494
    %560 = vrot.lane.b32.xlu0 %v557, 32
    %v561 = vpop.permute.xlu0 %560
    %v563 = vmul.f32 %v557, %v561
    %565 = vrot.lane.b32.xlu0 %v563, 32
    %v566 = vpop.permute.xlu0 %565
    %v568 = vadd.f32 %v558, %v566
    %v569 = vtanh.pop %v568
    %571 = vrot.lane.b32.xlu0 %v569, 32
    %v572 = vpop.permute.xlu0 %571
    %v574 = vmul.f32 %v557, %v572
    %v575 = vld [vmem:[#allocation2 + $0x7] sm:$0x1]
    %v576 = vld [vmem:[#allocation2 + $0xf] sm:$0x1]
    %578 = vrot.lane.b32.xlu0 %v574, 64
    %v579 = vpop.permute.xlu0 %578
    %v580 = vsel %vm57, %v579, 0
    %582 = vmatpush.msra.mxu0 0.0
    %583 = vmatpush.msra.mxu0 0.0
    %584 = vmatpush.msra.mxu0 0.0
    %585 = vmatpush.msra.mxu0 0.0
    %586 = vmatpush.msra.mxu0 0.0
    %587 = vmatpush.msra.mxu0 0.0
    %588 = vmatpush.msra.mxu0 0.0
    %589 = vmatpush.msra.mxu0 0.0
    %590 = vmatpush.msra.mxu0 0.0
    %591 = vmatpush.msra.mxu0 0.0
    %592 = vmatpush.msra.mxu0 0.0
    %593 = vmatpush.msra.mxu0 0.0
    %594 = vmatpush.msra.mxu0 %v47
    %595 = vmatpush.msra.mxu0 %v46
    %596 = vmatpush.msra.mxu0 %v45
    %597 = vmatpush.msra.mxu0 %v44
    %598 = vmatmul.f32.gmra.mxu0 %v580
    %v599 = vpop.f32.mrf.mxu0
    %v600 = vadd.f32 0.0, %v599
    %601 = vdwg.mxu0
    %v604 = vrot.slane %v576, 7
    %v605 = vsel %vm84, %v604, %v575
    %v606 = vsel %vm86, %v605, 0
    %608 = vmatpush.msra.mxu0 0.0
    %609 = vmatpush.msra.mxu0 0.0
    %610 = vmatpush.msra.mxu0 0.0
    %611 = vmatpush.msra.mxu0 0.0
    %612 = vmatpush.msra.mxu0 0.0
    %613 = vmatpush.msra.mxu0 0.0
    %614 = vmatpush.msra.mxu0 0.0
    %615 = vmatpush.msra.mxu0 0.0
    %616 = vmatpush.msra.mxu0 0.0
    %617 = vmatpush.msra.mxu0 0.0
    %618 = vmatpush.msra.mxu0 0.0
    %619 = vmatpush.msra.mxu0 0.0
    %620 = vmatpush.msra.mxu0 0.0
    %621 = vmatpush.msra.mxu0 0.0
    %622 = vmatpush.msra.mxu0 0.0
    %623 = vmatpush.msra.mxu0 %v43
    %624 = vmatmul.f32.gmra.mxu0 %v606
    %v625 = vpop.f32.mrf.mxu0
    %v626 = vadd.f32 %v600, %v625
    %627 = vdwg.mxu0
    %v628 = vadd.f32 %v626, %v109
    %v629 = vtanh.pop %v628
    %v630 = vmul.f32 %v629, %v53
    %v631 = vadd.f32 %v630, %v54
    %v632 = vmul.f32 %v631, %v568
    %634 = vrot.lane.b32.xlu0 %v631, 32
    %v635 = vpop.permute.xlu0 %634
    %v637 = vmul.f32 %v631, %v635
    %639 = vrot.lane.b32.xlu0 %v637, 32
    %v640 = vpop.permute.xlu0 %639
    %v642 = vadd.f32 %v632, %v640
    %v643 = vtanh.pop %v642
    %645 = vrot.lane.b32.xlu0 %v643, 32
    %v646 = vpop.permute.xlu0 %645
    %v648 = vmul.f32 %v631, %v646
    %v649 = vperm.slane %v49, 0
    %651 = vrot.lane.b32.xlu0 %v649, 64
    %v652 = vpop.permute.xlu0 %651
    %v654 = vmul.f32 %v648, %v652
    %656 = vrot.lane.b32.xlu0 %v654, 64
    %v657 = vpop.permute.xlu0 %656
    %vm659 = vcmask 254976
    %v660 = vsel %vm659, %v657, 0.0
    %661 = vadd.xlane.f32.xlu0 %v660
    %v662 = vpop.xlane.xlu0 %661
    %v663 = vadd.f32 %v662, %v649
    %665 = vrot.lane.b32.xlu0 %v663, 96
    %v666 = vpop.permute.xlu0 %665
    %vm668 = vcmask 1024
    %669 = vst.msk [vmem:[%s2] sm:$0x3] %vm668, %v666
    // Predicated region
    $region18: #{lstm_model_forward.1} parent=1 // pred_check
      _
    $region19: #{lstm_model_forward.1} parent=1 // pred_check_branch
      %671 = sbr.rel (0) target = $region21
    $region20: #{lstm_model_forward.1} parent=1 // pred_region
      _
    $region21: #{lstm_model_forward.1} parent=1 // pred_fallthru
      _
    // Predicated region
    $region22: #{lstm_model_forward.1} parent=1 // pred_check
      _
    $region23: #{lstm_model_forward.1} parent=1 // pred_check_branch
      %673 = sbr.rel (0) target = $region25
    $region24: #{lstm_model_forward.1} parent=1 // pred_region
      _
    $region25: #{lstm_model_forward.1} parent=1 // pred_fallthru
      _
    %674 = vsyncpa [#allocation3], 1
    %675 = vsyncpa [#allocation5], 1

</llo_original>
